<compile_context>
chip_gen: v6e
topology: v6e:2x2x1
jax: 0.10.0
libtpu: 0.0.40
codegen_flags: <defaults>
</compile_context>

<pallas_src>
import functools

import jax
import jax.numpy as jnp
from jax.experimental import pallas as pl
from jax.experimental.pallas import tpu as pltpu

LANE = 128      # vreg lane width
SUBLANE = 8     # vreg sublane count (f32)

VMEM_BUDGET = 24 * 1024 * 1024       # conservative; fits v5e/v6e/v7x scoped VMEM
MiB = 1024 * 1024


def _round_up(x, m):
    return (x + m - 1) // m * m


def _vmem_bytes(TB, Fin, TN, w_bufs, x_itemsize, w_itemsize):
    x_bytes = 2 * TB * Fin * x_itemsize        # double-buffered x tiles
    y_bytes = 2 * TB * TN * x_itemsize         # double-buffered output tiles
    w_bytes = w_bufs * Fin * TN * w_itemsize   # resident W^{-1} tile(s)
    b_bytes = 2 * TN * 4                       # b' tile(s)
    return x_bytes + y_bytes + w_bytes + b_bytes


def _inverse_affine_kernel(x_ref, winv_ref, bprime_ref, o_ref):
    # o = x @ W^{-1} - b'   (b' = b @ W^{-1} folded in the wrapper)
    y = jnp.dot(x_ref[...], winv_ref[...], preferred_element_type=jnp.float32)
    o_ref[...] = (y - bprime_ref[...]).astype(o_ref.dtype)


def inverse_forward(inputs, w, b, deterministic=False, tb=512):
    """Inverse(affine base).forward: returns ((inputs - b) @ W^{-1}, logdet).

    inputs : (batch, base.output_features) float32 or bfloat16
    w      : (base.input_features, base.output_features) float, invertible (square)
    b      : (base.output_features,) float
    """
    del deterministic  # deterministic affine transform
    B, Fin = inputs.shape                  # Fin == base.output_features
    Fout = w.shape[0]                      # Fout == base.input_features
    assert w.shape == (Fout, Fin) and Fout == Fin, \
        "base affine model must be square/invertible"

    # ---- parameter-only precompute (no batch dependence) --------------------
    w_f32 = w.astype(jnp.float32)
    w_inv = jnp.linalg.inv(w_f32)                                   # (Fin, Fout)
    b_prime = b.astype(jnp.float32).reshape(1, Fin) @ w_inv          # (1, Fout)
    _, logabsdet = jnp.linalg.slogdet(w_f32)
    logdet = -logabsdet                    # Jacobian log-det of the inverse map

    compute_dtype = inputs.dtype
    if compute_dtype == jnp.bfloat16:
        # Halve W HBM/VMEM bytes; MXU still accumulates in f32.
        w_inv = w_inv.astype(jnp.bfloat16)
    else:
        w_inv = w_inv.astype(jnp.float32)
    b_prime = b_prime.astype(jnp.float32)  # post-matmul subtract kept in f32

    x_isz = inputs.dtype.itemsize
    w_isz = w_inv.dtype.itemsize

    # ---- tiling -------------------------------------------------------------
    # N (Fout) axis: full dim when modest (block dim == array dim bypasses the
    # lane-128 rule; masked vst is cheap); 128-multiple tiles when large
    # (ragged final N block is masked by Pallas).
    TN = Fout if Fout <= 2048 else 1024

    # Resident W^{-1}: single-buffer it when the block is big enough that the
    # second pipeline buffer would cost meaningful VMEM (matters most on v7x).
    w_block_bytes = Fin * TN * w_isz
    w_bufs = 1 if w_block_bytes > 2 * MiB else 2

    # Batch tile: block dim == B for tiny batches; otherwise a sublane multiple,
    # capped so the batch grid has >=2 steps (v7x megacore) and shrunk to fit
    # the VMEM budget.  Ragged final batch block is masked -> no batch pad.
    if B <= SUBLANE:
        TB = B
    else:
        TB = _round_up(min(tb, B), SUBLANE)
        if B >= 2 * SUBLANE:
            TB = min(TB, _round_up(max(SUBLANE, B // 2), SUBLANE))
        while TB > SUBLANE and _vmem_bytes(TB, Fin, TN, w_bufs, x_isz, w_isz) > VMEM_BUDGET:
            TB = max(SUBLANE, _round_up(TB // 2, SUBLANE))

    vmem_need = _vmem_bytes(TB, Fin, TN, w_bufs, x_isz, w_isz)
    vmem_limit = int(min(48 * MiB, max(16 * MiB, vmem_need + 8 * MiB)))

    grid = (pl.cdiv(B, TB), pl.cdiv(Fout, TN))

    w_spec_kwargs = {}
    if w_bufs == 1:
        w_spec_kwargs = dict(pipeline_mode=pl.Buffered(1))
    w_spec = pl.BlockSpec((Fin, TN), lambda i, j: (0, j), **w_spec_kwargs)

    cost = pl.CostEstimate(
        flops=2 * B * Fin * Fout,
        transcendentals=0,
        bytes_accessed=x_isz * (B * Fin + B * Fout) + w_isz * Fin * Fout + 4 * Fout,
    )

    outputs = pl.pallas_call(
        _inverse_affine_kernel,
        out_shape=jax.ShapeDtypeStruct((B, Fout), compute_dtype),
        grid_spec=pl.GridSpec(
            grid=grid,
            in_specs=[
                # x: batch-tiled, double-buffered; stays resident across the N axis.
                pl.BlockSpec((TB, Fin), lambda i, j: (i, 0)),
                # W^{-1}: VMEM-resident across batch steps, N-tiled.
                w_spec,
                # b' = b @ W^{-1}: tiny, N-tiled.
                pl.BlockSpec((1, TN), lambda i, j: (0, j)),
            ],
            out_specs=pl.BlockSpec((TB, TN), lambda i, j: (i, j)),
        ),
        compiler_params=pltpu.CompilerParams(
            dimension_semantics=("parallel", "parallel"),
            vmem_limit_bytes=vmem_limit,
        ),
        cost_estimate=cost,
    )(inputs, w_inv, b_prime)

    additional_info = jnp.full((B,), logdet, dtype=jnp.float32)
    return outputs, additional_info


def init_base_affine_params(input_features=4, output_features=4, seed=0):
    """Deterministic, well-conditioned invertible affine base model z = x @ W + b."""
    kw, kb = jax.random.split(jax.random.PRNGKey(seed))
    w = (jnp.eye(input_features, output_features, dtype=jnp.float32)
         + 0.1 * jax.random.normal(kw, (input_features, output_features), dtype=jnp.float32))
    b = 0.01 * jax.random.normal(kb, (output_features,), dtype=jnp.float32)
    return w, b


if __name__ == "__main__":
    # Small shapes consistent with the module: batch=8, base in/out features=4.
    batch, features = 8, 4

    w, b = init_base_affine_params(features, features, seed=0)

    # Latent z produced by the (conceptual) base encoder; Inverse.forward decodes it.
    key = jax.random.PRNGKey(0)
    x0 = jax.random.normal(key, (batch, features), dtype=jnp.float32)
    z = x0 @ w + b                                   # base.forward(x0)

    fwd = functools.partial(inverse_forward, deterministic=True)
    y, additional_info = fwd(z, w, b)
    y = jax.block_until_ready(y)

    # References in plain JAX.
    y_ref = (z - b) @ jnp.linalg.inv(w)              # base.inverse(z)
    _, logabsdet = jnp.linalg.slogdet(w)
    logdet_ref = -logabsdet

    assert y.shape == (batch, features)
    assert y.dtype == jnp.float32
    assert additional_info.shape == (batch,)
    assert jnp.allclose(y, y_ref, atol=1e-5, rtol=1e-5)
    assert jnp.allclose(y, x0, atol=1e-4, rtol=1e-4)            # round-trip recovers x0
    assert jnp.allclose(additional_info, logdet_ref, atol=1e-5)

    print("KERNEL_OK")
</pallas_src>

<mosaic_0001>
module attributes {stable_mosaic.version = 11 : i64} {
  func.func @_inverse_affine_kernel(%arg0: i32, %arg1: i32, %arg2: memref<8x4xf32, #tpu.memory_space<vmem>>, %arg3: memref<4x4xf32, #tpu.memory_space<vmem>>, %arg4: memref<1x4xf32, #tpu.memory_space<vmem>>, %arg5: memref<8x4xf32, #tpu.memory_space<vmem>>) attributes {dimension_semantics = [#tpu.dimension_semantics<parallel>, #tpu.dimension_semantics<parallel>], iteration_bounds = array<i64: 1, 1>, scalar_prefetch = 0 : i64, scratch_operands = 0 : i64, tpu.core_type = #tpu.core_type<tc>, window_params = [{transform_indices = @transform_0, window_bounds = array<i64: 8, 4>}, {transform_indices = @transform_1, window_bounds = array<i64: 4, 4>}, {transform_indices = @transform_2, window_bounds = array<i64: 1, 4>}, {transform_indices = @transform_3, window_bounds = array<i64: 8, 4>}]} {
    %c0 = arith.constant 0 : index
    %c0_0 = arith.constant 0 : index
    %0 = vector.load %arg2[%c0, %c0_0] : memref<8x4xf32, #tpu.memory_space<vmem>>, vector<8x4xf32>
    %c0_1 = arith.constant 0 : index
    %c0_2 = arith.constant 0 : index
    %1 = vector.load %arg3[%c0_1, %c0_2] : memref<4x4xf32, #tpu.memory_space<vmem>>, vector<4x4xf32>
    %cst = arith.constant dense<0.000000e+00> : vector<8x4xf32>
    %2 = tpu.matmul %0, %1, %cst {dimension_numbers = #tpu.dot_dimension_numbers<[1], [0], [0], [1], [0, 0, 1, 1], [], []>} : vector<8x4xf32>, vector<4x4xf32>, vector<8x4xf32> -> vector<8x4xf32>
    %c0_3 = arith.constant 0 : index
    %c0_4 = arith.constant 0 : index
    %3 = vector.load %arg4[%c0_3, %c0_4] : memref<1x4xf32, #tpu.memory_space<vmem>>, vector<1x4xf32>
    %4 = vector.broadcast %3 : vector<1x4xf32> to vector<8x4xf32>
    %5 = arith.subf %2, %4 : vector<8x4xf32>
    %c0_5 = arith.constant 0 : index
    %c0_6 = arith.constant 0 : index
    %6 = vector.load %arg5[%c0_5, %c0_6] : memref<8x4xf32, #tpu.memory_space<vmem>>, vector<8x4xf32>
    tpu.vector_store %arg5[%c0_5, %c0_6], %5 {strides = array<i32>} : memref<8x4xf32, #tpu.memory_space<vmem>>, vector<8x4xf32>,
    return
  }
  func.func @transform_0(%arg0: i32, %arg1: i32) -> (i32, i32) {
    %c0_i32 = arith.constant 0 : i32
    %c0_i32_0 = arith.constant 0 : i32
    return %arg0, %c0_i32 : i32, i32
  }
  func.func @transform_1(%arg0: i32, %arg1: i32) -> (i32, i32) {
    %c0_i32 = arith.constant 0 : i32
    %c0_i32_0 = arith.constant 0 : i32
    return %c0_i32, %arg1 : i32, i32
  }
  func.func @transform_2(%arg0: i32, %arg1: i32) -> (i32, i32) {
    %c0_i32 = arith.constant 0 : i32
    %c0_i32_0 = arith.constant 0 : i32
    return %c0_i32, %arg1 : i32, i32
  }
  func.func @transform_3(%arg0: i32, %arg1: i32) -> (i32, i32) {
    %c0_i32 = arith.constant 0 : i32
    return %arg0, %arg1 : i32, i32
  }
}

</mosaic_0001>

<llo_original>
// kernel: tpu_custom_call.1
$region0: #{tpu_custom_call.1}
  #allocation0 [shape = 'u32[]', space=smem, size = 0x4, offset = 0x4, fixed_abs, tag = 'smem constant byte address 0x4 - core index']
  #allocation1 [shape = 'u32[144,128]{1,0:T(1,128)}', space=vmem, size = 0x12000, scoped, tag = 'internal scratch']
  %s0 = inlined_call_operand.vmem [shape: f32[8,4], index: 0, kind: input, shape index: {}]
  %s1 = inlined_call_operand.vmem [shape: f32[4,4], index: 1, kind: input, shape index: {}]
  %s2 = inlined_call_operand.vmem [shape: f32[1,4], index: 2, kind: input, shape index: {}]
  %s3 = inlined_call_operand.vmem [shape: f32[8,4], index: 3, kind: output, shape index: {}]
  %s4 = sld [smem:[#allocation0]]
  $region22: #{tpu_custom_call.1} parent=0
    _
  %s6 = ssub.s32 1, %s4
  %s7 = scalar_select 0, %s6, %s4
  // Predicated region
  $region2: #{tpu_custom_call.1} parent=0 // pred_check
    _
  $region3: #{tpu_custom_call.1} parent=0 // pred_check_branch
    %9 = sbr.rel (0) target = $region5
  $region4: #{tpu_custom_call.1} parent=0 // pred_region
    _
  $region5: #{tpu_custom_call.1} parent=0 // pred_fallthru
    _
  // Predicated region
  $region6: #{tpu_custom_call.1} parent=0 // pred_check
    _
  $region7: #{tpu_custom_call.1} parent=0 // pred_check_branch
    %11 = sbr.rel (0) target = $region9
  $region8: #{tpu_custom_call.1} parent=0 // pred_region
    _
  $region9: #{tpu_custom_call.1} parent=0 // pred_fallthru
    _
  // Predicated region
  $region10: #{tpu_custom_call.1} parent=0 // pred_check
    _
  $region11: #{tpu_custom_call.1} parent=0 // pred_check_branch
    %13 = sbr.rel (0) target = $region13
  $region12: #{tpu_custom_call.1} parent=0 // pred_region
    _
  $region13: #{tpu_custom_call.1} parent=0 // pred_fallthru
    _
  %v14 = vld [vmem:[%s0] sm:$0xff]
  %v15 = vld [vmem:[%s1] sm:$0xf]
  %vm16 = vcmask 31744
  %v18 = vsel %vm16, %v14, 0
  %vm20 = vcmask 1043456
  %v22 = vsel %vm20, %v15, 0
  %24 = vmatprep.subr.mxu0 0.0
  %25 = vmatpush1.msra.mxu0 0.0
  %26 = vmatprep.subr.mxu0 0.0
  %27 = vmatpush1.msra.mxu0 0.0
  %28 = vmatprep.subr.mxu0 0.0
  %29 = vmatpush1.msra.mxu0 0.0
  %30 = vmatprep.subr.mxu0 0.0
  %31 = vmatpush1.msra.mxu0 0.0
  %32 = vmatprep.subr.mxu0 0.0
  %33 = vmatpush1.msra.mxu0 0.0
  %34 = vmatprep.subr.mxu0 0.0
  %35 = vmatpush1.msra.mxu0 0.0
  %36 = vmatprep.subr.mxu0 0.0
  %37 = vmatpush1.msra.mxu0 0.0
  %38 = vmatprep.subr.mxu0 0.0
  %39 = vmatpush1.msra.mxu0 0.0
  %40 = vmatprep.subr.mxu0 0.0
  %41 = vmatpush1.msra.mxu0 0.0
  %42 = vmatprep.subr.mxu0 0.0
  %43 = vmatpush1.msra.mxu0 0.0
  %44 = vmatprep.subr.mxu0 0.0
  %45 = vmatpush1.msra.mxu0 0.0
  %46 = vmatprep.subr.mxu0 0.0
  %47 = vmatpush1.msra.mxu0 0.0
  %48 = vmatprep.subr.mxu0 0.0
  %49 = vmatpush1.msra.mxu0 0.0
  %50 = vmatprep.subr.mxu0 0.0
  %51 = vmatpush1.msra.mxu0 0.0
  %52 = vmatprep.subr.mxu0 0.0
  %53 = vmatpush1.msra.mxu0 0.0
  %54 = vmatprep.subr.mxu0 0.0
  %55 = vmatpush1.msra.mxu0 %v22
  %56 = vmatprep.subr.mxu0 0.0
  %57 = vmatpush2.msra.mxu0 0.0
  %58 = vmatprep.subr.mxu0 0.0
  %59 = vmatpush2.msra.mxu0 0.0
  %60 = vmatprep.subr.mxu0 0.0
  %61 = vmatpush2.msra.mxu0 0.0
  %62 = vmatprep.subr.mxu0 0.0
  %63 = vmatpush2.msra.mxu0 0.0
  %64 = vmatprep.subr.mxu0 0.0
  %65 = vmatpush2.msra.mxu0 0.0
  %66 = vmatprep.subr.mxu0 0.0
  %67 = vmatpush2.msra.mxu0 0.0
  %68 = vmatprep.subr.mxu0 0.0
  %69 = vmatpush2.msra.mxu0 0.0
  %70 = vmatprep.subr.mxu0 0.0
  %71 = vmatpush2.msra.mxu0 0.0
  %72 = vmatprep.subr.mxu0 0.0
  %73 = vmatpush2.msra.mxu0 0.0
  %74 = vmatprep.subr.mxu0 0.0
  %75 = vmatpush2.msra.mxu0 0.0
  %76 = vmatprep.subr.mxu0 0.0
  %77 = vmatpush2.msra.mxu0 0.0
  %78 = vmatprep.subr.mxu0 0.0
  %79 = vmatpush2.msra.mxu0 0.0
  %80 = vmatprep.subr.mxu0 0.0
  %81 = vmatpush2.msra.mxu0 0.0
  %82 = vmatprep.subr.mxu0 0.0
  %83 = vmatpush2.msra.mxu0 0.0
  %84 = vmatprep.subr.mxu0 0.0
  %85 = vmatpush2.msra.mxu0 0.0
  %86 = vmatprep.subr.mxu0 0.0
  %87 = vmatpush2.msra.mxu0 0.0
  %88 = vmatprep.mubr.f32.mxu0 0.0
  %89 = vmatmul.mubr.f32.gmra.mxu0 %v18
  %v90 = vpop.f32.mrf.mxu0
  %v91 = vadd.f32 0.0, %v90
  %v92 = vpop.f32.mrf.mxu0
  %93 = vdwg.mxu0
  %v94 = vld [vmem:[%s2] sm:$0x1]
  %v96 = vlaneseq
  %v97 = vshrl.u32 %v96, 7
  %v98 = vsub.s32 0, %v97
  %v99 = vrot.slane %v94, %v98
  %v101 = vsub.f32 %v91, %v99
  %102 = vst.msk [vmem:[%s3] sm:$0xff] %vm16, %v101
  // Predicated region
  $region14: #{tpu_custom_call.1} parent=0 // pred_check
    _
  $region15: #{tpu_custom_call.1} parent=0 // pred_check_branch
    %104 = sbr.rel (0) target = $region17
  $region16: #{tpu_custom_call.1} parent=0 // pred_region
    _
  $region17: #{tpu_custom_call.1} parent=0 // pred_fallthru
    _
  // Predicated region
  $region18: #{tpu_custom_call.1} parent=0 // pred_check
    _
  $region19: #{tpu_custom_call.1} parent=0 // pred_check_branch
    %106 = sbr.rel (0) target = $region21
  $region20: #{tpu_custom_call.1} parent=0 // pred_region
    _
  $region21: #{tpu_custom_call.1} parent=0 // pred_fallthru
    _

</llo_original>
